<compile_context>
chip_gen: v6e
topology: v6e:2x2x1
jax: 0.10.0
libtpu: 0.0.40
codegen_flags: <defaults>
</compile_context>

<pallas_src>
import functools

import jax
import jax.numpy as jnp
from jax.experimental import pallas as pl
from jax.experimental.pallas import tpu as pltpu


def _lstm_core_kernel(x_ref, w_cat_ref, b_ref, w_out_ref, b_out_ref, out_ref,
                      *, hidden_size, length):
    """Single invocation: full recurrence + linear head.

    x_ref:     (T, B, I)      time-major input slab (VMEM)
    w_cat_ref: (I+H, 4H)      stacked [W_ih^T; W_hh^T], gate order [i|f|o|g]
    b_ref:     (1, 4H)        b_ih + b_hh, gate order [i|f|o|g]
    w_out_ref: (H, C_pad)     W_out^T pre-scaled by 1/length, zero-padded lanes
    b_out_ref: (1, C_pad)     b_out, zero-padded lanes
    out_ref:   (B, C_pad)     lane-dense padded logits
    """
    H = hidden_size
    B = x_ref.shape[1]

    w_cat = w_cat_ref[...]
    b = b_ref[...]

    def step(t, carry):
        h, c, hsum = carry
        x_t = x_ref[t]                                     # (B, I)
        xh = jnp.concatenate([x_t, h], axis=-1)            # (B, I+H)
        gates = jnp.dot(xh, w_cat,
                        preferred_element_type=jnp.float32) + b   # (B, 4H)

        # Gate order after wrapper reorder: [i | f | o | g].
        sig = jax.nn.sigmoid(gates[:, : 3 * H])            # one contiguous slab
        g_g = jnp.tanh(gates[:, 3 * H:])
        i_g = sig[:, 0 * H:1 * H]
        f_g = sig[:, 1 * H:2 * H]
        o_g = sig[:, 2 * H:3 * H]

        c_new = f_g * c + i_g * g_g
        h_new = o_g * jnp.tanh(c_new)
        return h_new, c_new, hsum + h_new

    zeros = jnp.zeros((B, H), jnp.float32)
    _, _, hsum = jax.lax.fori_loop(0, length, step, (zeros, zeros, zeros),
                                   unroll=True)

    # 1/length is already folded into w_out_ref in the wrapper.
    logits = (jnp.dot(hsum, w_out_ref[...],
                      preferred_element_type=jnp.float32) + b_out_ref[...])
    out_ref[...] = logits.astype(out_ref.dtype)


def lstm_core_forward(X, params):
    """X: (batch, length, input_size) float32. Returns logits (batch, num_classes)."""
    B, T, I = X.shape
    H = params["w_hh"].shape[1]          # w_hh: (4H, H)
    C = params["w_out"].shape[0]         # w_out: (C, H)
    C_pad = max(128, ((C + 127) // 128) * 128)   # lane-dense head output

    # ---- layout plumbing (wrapper-side, outside the kernel) ----
    x_tm = jnp.transpose(X, (1, 0, 2)).astype(jnp.float32)        # (T, B, I)

    def reorder_gates(a, axis):
        # PyTorch order [i|f|g|o] -> [i|f|o|g] (sigmoid gates contiguous).
        i_f = jax.lax.slice_in_dim(a, 0 * H, 2 * H, axis=axis)
        g = jax.lax.slice_in_dim(a, 2 * H, 3 * H, axis=axis)
        o = jax.lax.slice_in_dim(a, 3 * H, 4 * H, axis=axis)
        return jnp.concatenate([i_f, o, g], axis=axis)

    # Fused gate weight: [W_ih^T; W_hh^T] -> (I+H, 4H), columns reordered.
    w_cat = jnp.concatenate([jnp.transpose(params["w_ih"]),
                             jnp.transpose(params["w_hh"])], axis=0)
    w_cat = reorder_gates(w_cat, axis=1).astype(jnp.float32)
    b = reorder_gates((params["b_ih"] + params["b_hh"]).reshape(1, 4 * H),
                      axis=1).astype(jnp.float32)

    # Head: fold the 1/length average into W_out; pad C -> C_pad lanes.
    w_out_t = jnp.transpose(params["w_out"]).astype(jnp.float32) / float(T)  # (H, C)
    w_out_p = jnp.zeros((H, C_pad), jnp.float32).at[:, :C].set(w_out_t)
    b_out_p = jnp.zeros((1, C_pad), jnp.float32).at[:, :C].set(
        params["b_out"].reshape(1, C).astype(jnp.float32))

    kernel = functools.partial(_lstm_core_kernel, hidden_size=H, length=T)

    vmem = pl.BlockSpec(memory_space=pltpu.MemorySpace.VMEM)

    logits_padded = pl.pallas_call(
        kernel,
        out_shape=jax.ShapeDtypeStruct((B, C_pad), jnp.float32),
        in_specs=[vmem, vmem, vmem, vmem, vmem],
        out_specs=vmem,
    )(x_tm, w_cat, b, w_out_p, b_out_p)

    return logits_padded[:, :C]


def lstm_core_reference(X, params):
    """Pure-JAX reference mirroring the PyTorch module (sanity check)."""
    B, T, I = X.shape
    H = params["w_hh"].shape[1]
    h = jnp.zeros((B, H), jnp.float32)
    c = jnp.zeros((B, H), jnp.float32)
    h_sum = jnp.zeros((B, H), jnp.float32)
    for t in range(T):
        gates = (X[:, t] @ params["w_ih"].T + params["b_ih"]
                 + h @ params["w_hh"].T + params["b_hh"])
        i_g, f_g, g_g, o_g = jnp.split(gates, 4, axis=1)
        c = jax.nn.sigmoid(f_g) * c + jax.nn.sigmoid(i_g) * jnp.tanh(g_g)
        h = jax.nn.sigmoid(o_g) * jnp.tanh(c)
        h_sum = h_sum + h
    states = h_sum / float(T)
    return states @ params["w_out"].T + params["b_out"]


def init_params(key, input_size, hidden_size, num_classes):
    """Deterministic init (uniform +-1/sqrt(H), matching nn.LSTMCell/Linear style)."""
    ks = jax.random.split(key, 6)
    bound = 1.0 / jnp.sqrt(hidden_size)
    u = lambda k, shp: jax.random.uniform(k, shp, jnp.float32, -bound, bound)
    return {
        "w_ih": u(ks[0], (4 * hidden_size, input_size)),
        "w_hh": u(ks[1], (4 * hidden_size, hidden_size)),
        "b_ih": u(ks[2], (4 * hidden_size,)),
        "b_hh": u(ks[3], (4 * hidden_size,)),
        "w_out": u(ks[4], (num_classes, hidden_size)),
        "b_out": u(ks[5], (num_classes,)),
    }


if __name__ == "__main__":
    # Small shapes consistent with the module's forward:
    #   batch=8, seq length=8, per-slice input_size=16, hidden=32, num_classes=10
    B, T, I, H, C = 8, 8, 16, 32, 10

    key = jax.random.PRNGKey(0)
    k_x, k_p = jax.random.split(key)
    X = jax.random.normal(k_x, (B, T, I), jnp.float32)
    params = init_params(k_p, I, H, C)

    logits = jax.block_until_ready(lstm_core_forward(X, params))
    ref = lstm_core_reference(X, params)

    assert logits.shape == (B, C)
    assert jnp.max(jnp.abs(logits - ref)) < 1e-4, "mismatch vs reference"
    print("KERNEL_OK")
</pallas_src>

<mosaic_0001>
module attributes {stable_mosaic.version = 11 : i64} {
  func.func @_lstm_core_kernel(%arg0: memref<8x8x16xf32, #tpu.memory_space<vmem>>, %arg1: memref<48x128xf32, #tpu.memory_space<vmem>>, %arg2: memref<1x128xf32, #tpu.memory_space<vmem>>, %arg3: memref<32x128xf32, #tpu.memory_space<vmem>>, %arg4: memref<1x128xf32, #tpu.memory_space<vmem>>, %arg5: memref<8x128xf32, #tpu.memory_space<vmem>>) attributes {dimension_semantics = [], scalar_prefetch = 0 : i64, scratch_operands = 0 : i64, tpu.core_type = #tpu.core_type<tc>} {
    %c0 = arith.constant 0 : index
    %c0_0 = arith.constant 0 : index
    %0 = vector.load %arg1[%c0, %c0_0] : memref<48x128xf32, #tpu.memory_space<vmem>>, vector<48x128xf32>
    %c0_1 = arith.constant 0 : index
    %c0_2 = arith.constant 0 : index
    %1 = vector.load %arg2[%c0_1, %c0_2] : memref<1x128xf32, #tpu.memory_space<vmem>>, vector<1x128xf32>
    %cst = arith.constant 0.000000e+00 : f32
    %2 = vector.broadcast %cst : f32 to vector<8x32xf32>
    %c0_i32 = arith.constant 0 : i32
    %3 = arith.index_cast %c0_i32 : i32 to index
    %c0_3 = arith.constant 0 : index
    %c0_4 = arith.constant 0 : index
    %4 = vector.load %arg0[%3, %c0_3, %c0_4] : memref<8x8x16xf32, #tpu.memory_space<vmem>>, vector<1x8x16xf32>
    %5 = vector.shape_cast %4 : vector<1x8x16xf32> to vector<8x16xf32>
    %6 = tpu.concatenate %5, %2 in 1 : vector<8x16xf32>, vector<8x32xf32> -> vector<8x48xf32>
    %cst_5 = arith.constant dense<0.000000e+00> : vector<8x128xf32>
    %7 = tpu.matmul %6, %0, %cst_5 {dimension_numbers = #tpu.dot_dimension_numbers<[1], [0], [0], [1], [0, 0, 1, 1], [], []>} : vector<8x48xf32>, vector<48x128xf32>, vector<8x128xf32> -> vector<8x128xf32>
    %8 = vector.broadcast %1 : vector<1x128xf32> to vector<8x128xf32>
    %9 = arith.addf %7, %8 : vector<8x128xf32>
    %10 = vector.extract_strided_slice %9 {offsets = [0, 0], sizes = [8, 96], strides = [1, 1]} : vector<8x128xf32> to vector<8x96xf32>
    %11 = arith.negf %10 : vector<8x96xf32>
    %12 = math.exp %11 : vector<8x96xf32>
    %cst_6 = arith.constant 1.000000e+00 : f32
    %13 = vector.broadcast %cst_6 : f32 to vector<8x96xf32>
    %14 = arith.addf %13, %12 : vector<8x96xf32>
    %15 = arith.divf %13, %14 : vector<8x96xf32>
    %16 = vector.extract_strided_slice %9 {offsets = [0, 96], sizes = [8, 32], strides = [1, 1]} : vector<8x128xf32> to vector<8x32xf32>
    %17 = math.tanh %16 : vector<8x32xf32>
    %18 = vector.extract_strided_slice %15 {offsets = [0, 0], sizes = [8, 32], strides = [1, 1]} : vector<8x96xf32> to vector<8x32xf32>
    %19 = vector.extract_strided_slice %15 {offsets = [0, 32], sizes = [8, 32], strides = [1, 1]} : vector<8x96xf32> to vector<8x32xf32>
    %20 = vector.extract_strided_slice %15 {offsets = [0, 64], sizes = [8, 32], strides = [1, 1]} : vector<8x96xf32> to vector<8x32xf32>
    %21 = arith.mulf %19, %2 : vector<8x32xf32>
    %22 = arith.mulf %18, %17 : vector<8x32xf32>
    %23 = arith.addf %21, %22 : vector<8x32xf32>
    %24 = math.tanh %23 : vector<8x32xf32>
    %25 = arith.mulf %20, %24 : vector<8x32xf32>
    %26 = arith.addf %2, %25 : vector<8x32xf32>
    %c1_i32 = arith.constant 1 : i32
    %27 = arith.index_cast %c1_i32 : i32 to index
    %c0_7 = arith.constant 0 : index
    %c0_8 = arith.constant 0 : index
    %28 = vector.load %arg0[%27, %c0_7, %c0_8] : memref<8x8x16xf32, #tpu.memory_space<vmem>>, vector<1x8x16xf32>
    %29 = vector.shape_cast %28 : vector<1x8x16xf32> to vector<8x16xf32>
    %30 = tpu.concatenate %29, %25 in 1 : vector<8x16xf32>, vector<8x32xf32> -> vector<8x48xf32>
    %cst_9 = arith.constant dense<0.000000e+00> : vector<8x128xf32>
    %31 = tpu.matmul %30, %0, %cst_9 {dimension_numbers = #tpu.dot_dimension_numbers<[1], [0], [0], [1], [0, 0, 1, 1], [], []>} : vector<8x48xf32>, vector<48x128xf32>, vector<8x128xf32> -> vector<8x128xf32>
    %32 = vector.broadcast %1 : vector<1x128xf32> to vector<8x128xf32>
    %33 = arith.addf %31, %32 : vector<8x128xf32>
    %34 = vector.extract_strided_slice %33 {offsets = [0, 0], sizes = [8, 96], strides = [1, 1]} : vector<8x128xf32> to vector<8x96xf32>
    %35 = arith.negf %34 : vector<8x96xf32>
    %36 = math.exp %35 : vector<8x96xf32>
    %cst_10 = arith.constant 1.000000e+00 : f32
    %37 = vector.broadcast %cst_10 : f32 to vector<8x96xf32>
    %38 = arith.addf %37, %36 : vector<8x96xf32>
    %39 = arith.divf %37, %38 : vector<8x96xf32>
    %40 = vector.extract_strided_slice %33 {offsets = [0, 96], sizes = [8, 32], strides = [1, 1]} : vector<8x128xf32> to vector<8x32xf32>
    %41 = math.tanh %40 : vector<8x32xf32>
    %42 = vector.extract_strided_slice %39 {offsets = [0, 0], sizes = [8, 32], strides = [1, 1]} : vector<8x96xf32> to vector<8x32xf32>
    %43 = vector.extract_strided_slice %39 {offsets = [0, 32], sizes = [8, 32], strides = [1, 1]} : vector<8x96xf32> to vector<8x32xf32>
    %44 = vector.extract_strided_slice %39 {offsets = [0, 64], sizes = [8, 32], strides = [1, 1]} : vector<8x96xf32> to vector<8x32xf32>
    %45 = arith.mulf %43, %23 : vector<8x32xf32>
    %46 = arith.mulf %42, %41 : vector<8x32xf32>
    %47 = arith.addf %45, %46 : vector<8x32xf32>
    %48 = math.tanh %47 : vector<8x32xf32>
    %49 = arith.mulf %44, %48 : vector<8x32xf32>
    %50 = arith.addf %26, %49 : vector<8x32xf32>
    %c2_i32 = arith.constant 2 : i32
    %51 = arith.index_cast %c2_i32 : i32 to index
    %c0_11 = arith.constant 0 : index
    %c0_12 = arith.constant 0 : index
    %52 = vector.load %arg0[%51, %c0_11, %c0_12] : memref<8x8x16xf32, #tpu.memory_space<vmem>>, vector<1x8x16xf32>
    %53 = vector.shape_cast %52 : vector<1x8x16xf32> to vector<8x16xf32>
    %54 = tpu.concatenate %53, %49 in 1 : vector<8x16xf32>, vector<8x32xf32> -> vector<8x48xf32>
    %cst_13 = arith.constant dense<0.000000e+00> : vector<8x128xf32>
    %55 = tpu.matmul %54, %0, %cst_13 {dimension_numbers = #tpu.dot_dimension_numbers<[1], [0], [0], [1], [0, 0, 1, 1], [], []>} : vector<8x48xf32>, vector<48x128xf32>, vector<8x128xf32> -> vector<8x128xf32>
    %56 = vector.broadcast %1 : vector<1x128xf32> to vector<8x128xf32>
    %57 = arith.addf %55, %56 : vector<8x128xf32>
    %58 = vector.extract_strided_slice %57 {offsets = [0, 0], sizes = [8, 96], strides = [1, 1]} : vector<8x128xf32> to vector<8x96xf32>
    %59 = arith.negf %58 : vector<8x96xf32>
    %60 = math.exp %59 : vector<8x96xf32>
    %cst_14 = arith.constant 1.000000e+00 : f32
    %61 = vector.broadcast %cst_14 : f32 to vector<8x96xf32>
    %62 = arith.addf %61, %60 : vector<8x96xf32>
    %63 = arith.divf %61, %62 : vector<8x96xf32>
    %64 = vector.extract_strided_slice %57 {offsets = [0, 96], sizes = [8, 32], strides = [1, 1]} : vector<8x128xf32> to vector<8x32xf32>
    %65 = math.tanh %64 : vector<8x32xf32>
    %66 = vector.extract_strided_slice %63 {offsets = [0, 0], sizes = [8, 32], strides = [1, 1]} : vector<8x96xf32> to vector<8x32xf32>
    %67 = vector.extract_strided_slice %63 {offsets = [0, 32], sizes = [8, 32], strides = [1, 1]} : vector<8x96xf32> to vector<8x32xf32>
    %68 = vector.extract_strided_slice %63 {offsets = [0, 64], sizes = [8, 32], strides = [1, 1]} : vector<8x96xf32> to vector<8x32xf32>
    %69 = arith.mulf %67, %47 : vector<8x32xf32>
    %70 = arith.mulf %66, %65 : vector<8x32xf32>
    %71 = arith.addf %69, %70 : vector<8x32xf32>
    %72 = math.tanh %71 : vector<8x32xf32>
    %73 = arith.mulf %68, %72 : vector<8x32xf32>
    %74 = arith.addf %50, %73 : vector<8x32xf32>
    %c3_i32 = arith.constant 3 : i32
    %75 = arith.index_cast %c3_i32 : i32 to index
    %c0_15 = arith.constant 0 : index
    %c0_16 = arith.constant 0 : index
    %76 = vector.load %arg0[%75, %c0_15, %c0_16] : memref<8x8x16xf32, #tpu.memory_space<vmem>>, vector<1x8x16xf32>
    %77 = vector.shape_cast %76 : vector<1x8x16xf32> to vector<8x16xf32>
    %78 = tpu.concatenate %77, %73 in 1 : vector<8x16xf32>, vector<8x32xf32> -> vector<8x48xf32>
    %cst_17 = arith.constant dense<0.000000e+00> : vector<8x128xf32>
    %79 = tpu.matmul %78, %0, %cst_17 {dimension_numbers = #tpu.dot_dimension_numbers<[1], [0], [0], [1], [0, 0, 1, 1], [], []>} : vector<8x48xf32>, vector<48x128xf32>, vector<8x128xf32> -> vector<8x128xf32>
    %80 = vector.broadcast %1 : vector<1x128xf32> to vector<8x128xf32>
    %81 = arith.addf %79, %80 : vector<8x128xf32>
    %82 = vector.extract_strided_slice %81 {offsets = [0, 0], sizes = [8, 96], strides = [1, 1]} : vector<8x128xf32> to vector<8x96xf32>
    %83 = arith.negf %82 : vector<8x96xf32>
    %84 = math.exp %83 : vector<8x96xf32>
    %cst_18 = arith.constant 1.000000e+00 : f32
    %85 = vector.broadcast %cst_18 : f32 to vector<8x96xf32>
    %86 = arith.addf %85, %84 : vector<8x96xf32>
    %87 = arith.divf %85, %86 : vector<8x96xf32>
    %88 = vector.extract_strided_slice %81 {offsets = [0, 96], sizes = [8, 32], strides = [1, 1]} : vector<8x128xf32> to vector<8x32xf32>
    %89 = math.tanh %88 : vector<8x32xf32>
    %90 = vector.extract_strided_slice %87 {offsets = [0, 0], sizes = [8, 32], strides = [1, 1]} : vector<8x96xf32> to vector<8x32xf32>
    %91 = vector.extract_strided_slice %87 {offsets = [0, 32], sizes = [8, 32], strides = [1, 1]} : vector<8x96xf32> to vector<8x32xf32>
    %92 = vector.extract_strided_slice %87 {offsets = [0, 64], sizes = [8, 32], strides = [1, 1]} : vector<8x96xf32> to vector<8x32xf32>
    %93 = arith.mulf %91, %71 : vector<8x32xf32>
    %94 = arith.mulf %90, %89 : vector<8x32xf32>
    %95 = arith.addf %93, %94 : vector<8x32xf32>
    %96 = math.tanh %95 : vector<8x32xf32>
    %97 = arith.mulf %92, %96 : vector<8x32xf32>
    %98 = arith.addf %74, %97 : vector<8x32xf32>
    %c4_i32 = arith.constant 4 : i32
    %99 = arith.index_cast %c4_i32 : i32 to index
    %c0_19 = arith.constant 0 : index
    %c0_20 = arith.constant 0 : index
    %100 = vector.load %arg0[%99, %c0_19, %c0_20] : memref<8x8x16xf32, #tpu.memory_space<vmem>>, vector<1x8x16xf32>
    %101 = vector.shape_cast %100 : vector<1x8x16xf32> to vector<8x16xf32>
    %102 = tpu.concatenate %101, %97 in 1 : vector<8x16xf32>, vector<8x32xf32> -> vector<8x48xf32>
    %cst_21 = arith.constant dense<0.000000e+00> : vector<8x128xf32>
    %103 = tpu.matmul %102, %0, %cst_21 {dimension_numbers = #tpu.dot_dimension_numbers<[1], [0], [0], [1], [0, 0, 1, 1], [], []>} : vector<8x48xf32>, vector<48x128xf32>, vector<8x128xf32> -> vector<8x128xf32>
    %104 = vector.broadcast %1 : vector<1x128xf32> to vector<8x128xf32>
    %105 = arith.addf %103, %104 : vector<8x128xf32>
    %106 = vector.extract_strided_slice %105 {offsets = [0, 0], sizes = [8, 96], strides = [1, 1]} : vector<8x128xf32> to vector<8x96xf32>
    %107 = arith.negf %106 : vector<8x96xf32>
    %108 = math.exp %107 : vector<8x96xf32>
    %cst_22 = arith.constant 1.000000e+00 : f32
    %109 = vector.broadcast %cst_22 : f32 to vector<8x96xf32>
    %110 = arith.addf %109, %108 : vector<8x96xf32>
    %111 = arith.divf %109, %110 : vector<8x96xf32>
    %112 = vector.extract_strided_slice %105 {offsets = [0, 96], sizes = [8, 32], strides = [1, 1]} : vector<8x128xf32> to vector<8x32xf32>
    %113 = math.tanh %112 : vector<8x32xf32>
    %114 = vector.extract_strided_slice %111 {offsets = [0, 0], sizes = [8, 32], strides = [1, 1]} : vector<8x96xf32> to vector<8x32xf32>
    %115 = vector.extract_strided_slice %111 {offsets = [0, 32], sizes = [8, 32], strides = [1, 1]} : vector<8x96xf32> to vector<8x32xf32>
    %116 = vector.extract_strided_slice %111 {offsets = [0, 64], sizes = [8, 32], strides = [1, 1]} : vector<8x96xf32> to vector<8x32xf32>
    %117 = arith.mulf %115, %95 : vector<8x32xf32>
    %118 = arith.mulf %114, %113 : vector<8x32xf32>
    %119 = arith.addf %117, %118 : vector<8x32xf32>
    %120 = math.tanh %119 : vector<8x32xf32>
    %121 = arith.mulf %116, %120 : vector<8x32xf32>
    %122 = arith.addf %98, %121 : vector<8x32xf32>
    %c5_i32 = arith.constant 5 : i32
    %123 = arith.index_cast %c5_i32 : i32 to index
    %c0_23 = arith.constant 0 : index
    %c0_24 = arith.constant 0 : index
    %124 = vector.load %arg0[%123, %c0_23, %c0_24] : memref<8x8x16xf32, #tpu.memory_space<vmem>>, vector<1x8x16xf32>
    %125 = vector.shape_cast %124 : vector<1x8x16xf32> to vector<8x16xf32>
    %126 = tpu.concatenate %125, %121 in 1 : vector<8x16xf32>, vector<8x32xf32> -> vector<8x48xf32>
    %cst_25 = arith.constant dense<0.000000e+00> : vector<8x128xf32>
    %127 = tpu.matmul %126, %0, %cst_25 {dimension_numbers = #tpu.dot_dimension_numbers<[1], [0], [0], [1], [0, 0, 1, 1], [], []>} : vector<8x48xf32>, vector<48x128xf32>, vector<8x128xf32> -> vector<8x128xf32>
    %128 = vector.broadcast %1 : vector<1x128xf32> to vector<8x128xf32>
    %129 = arith.addf %127, %128 : vector<8x128xf32>
    %130 = vector.extract_strided_slice %129 {offsets = [0, 0], sizes = [8, 96], strides = [1, 1]} : vector<8x128xf32> to vector<8x96xf32>
    %131 = arith.negf %130 : vector<8x96xf32>
    %132 = math.exp %131 : vector<8x96xf32>
    %cst_26 = arith.constant 1.000000e+00 : f32
    %133 = vector.broadcast %cst_26 : f32 to vector<8x96xf32>
    %134 = arith.addf %133, %132 : vector<8x96xf32>
    %135 = arith.divf %133, %134 : vector<8x96xf32>
    %136 = vector.extract_strided_slice %129 {offsets = [0, 96], sizes = [8, 32], strides = [1, 1]} : vector<8x128xf32> to vector<8x32xf32>
    %137 = math.tanh %136 : vector<8x32xf32>
    %138 = vector.extract_strided_slice %135 {offsets = [0, 0], sizes = [8, 32], strides = [1, 1]} : vector<8x96xf32> to vector<8x32xf32>
    %139 = vector.extract_strided_slice %135 {offsets = [0, 32], sizes = [8, 32], strides = [1, 1]} : vector<8x96xf32> to vector<8x32xf32>
    %140 = vector.extract_strided_slice %135 {offsets = [0, 64], sizes = [8, 32], strides = [1, 1]} : vector<8x96xf32> to vector<8x32xf32>
    %141 = arith.mulf %139, %119 : vector<8x32xf32>
    %142 = arith.mulf %138, %137 : vector<8x32xf32>
    %143 = arith.addf %141, %142 : vector<8x32xf32>
    %144 = math.tanh %143 : vector<8x32xf32>
    %145 = arith.mulf %140, %144 : vector<8x32xf32>
    %146 = arith.addf %122, %145 : vector<8x32xf32>
    %c6_i32 = arith.constant 6 : i32
    %147 = arith.index_cast %c6_i32 : i32 to index
    %c0_27 = arith.constant 0 : index
    %c0_28 = arith.constant 0 : index
    %148 = vector.load %arg0[%147, %c0_27, %c0_28] : memref<8x8x16xf32, #tpu.memory_space<vmem>>, vector<1x8x16xf32>
    %149 = vector.shape_cast %148 : vector<1x8x16xf32> to vector<8x16xf32>
    %150 = tpu.concatenate %149, %145 in 1 : vector<8x16xf32>, vector<8x32xf32> -> vector<8x48xf32>
    %cst_29 = arith.constant dense<0.000000e+00> : vector<8x128xf32>
    %151 = tpu.matmul %150, %0, %cst_29 {dimension_numbers = #tpu.dot_dimension_numbers<[1], [0], [0], [1], [0, 0, 1, 1], [], []>} : vector<8x48xf32>, vector<48x128xf32>, vector<8x128xf32> -> vector<8x128xf32>
    %152 = vector.broadcast %1 : vector<1x128xf32> to vector<8x128xf32>
    %153 = arith.addf %151, %152 : vector<8x128xf32>
    %154 = vector.extract_strided_slice %153 {offsets = [0, 0], sizes = [8, 96], strides = [1, 1]} : vector<8x128xf32> to vector<8x96xf32>
    %155 = arith.negf %154 : vector<8x96xf32>
    %156 = math.exp %155 : vector<8x96xf32>
    %cst_30 = arith.constant 1.000000e+00 : f32
    %157 = vector.broadcast %cst_30 : f32 to vector<8x96xf32>
    %158 = arith.addf %157, %156 : vector<8x96xf32>
    %159 = arith.divf %157, %158 : vector<8x96xf32>
    %160 = vector.extract_strided_slice %153 {offsets = [0, 96], sizes = [8, 32], strides = [1, 1]} : vector<8x128xf32> to vector<8x32xf32>
    %161 = math.tanh %160 : vector<8x32xf32>
    %162 = vector.extract_strided_slice %159 {offsets = [0, 0], sizes = [8, 32], strides = [1, 1]} : vector<8x96xf32> to vector<8x32xf32>
    %163 = vector.extract_strided_slice %159 {offsets = [0, 32], sizes = [8, 32], strides = [1, 1]} : vector<8x96xf32> to vector<8x32xf32>
    %164 = vector.extract_strided_slice %159 {offsets = [0, 64], sizes = [8, 32], strides = [1, 1]} : vector<8x96xf32> to vector<8x32xf32>
    %165 = arith.mulf %163, %143 : vector<8x32xf32>
    %166 = arith.mulf %162, %161 : vector<8x32xf32>
    %167 = arith.addf %165, %166 : vector<8x32xf32>
    %168 = math.tanh %167 : vector<8x32xf32>
    %169 = arith.mulf %164, %168 : vector<8x32xf32>
    %170 = arith.addf %146, %169 : vector<8x32xf32>
    %c7_i32 = arith.constant 7 : i32
    %171 = arith.index_cast %c7_i32 : i32 to index
    %c0_31 = arith.constant 0 : index
    %c0_32 = arith.constant 0 : index
    %172 = vector.load %arg0[%171, %c0_31, %c0_32] : memref<8x8x16xf32, #tpu.memory_space<vmem>>, vector<1x8x16xf32>
    %173 = vector.shape_cast %172 : vector<1x8x16xf32> to vector<8x16xf32>
    %174 = tpu.concatenate %173, %169 in 1 : vector<8x16xf32>, vector<8x32xf32> -> vector<8x48xf32>
    %cst_33 = arith.constant dense<0.000000e+00> : vector<8x128xf32>
    %175 = tpu.matmul %174, %0, %cst_33 {dimension_numbers = #tpu.dot_dimension_numbers<[1], [0], [0], [1], [0, 0, 1, 1], [], []>} : vector<8x48xf32>, vector<48x128xf32>, vector<8x128xf32> -> vector<8x128xf32>
    %176 = vector.broadcast %1 : vector<1x128xf32> to vector<8x128xf32>
    %177 = arith.addf %175, %176 : vector<8x128xf32>
    %178 = vector.extract_strided_slice %177 {offsets = [0, 0], sizes = [8, 96], strides = [1, 1]} : vector<8x128xf32> to vector<8x96xf32>
    %179 = arith.negf %178 : vector<8x96xf32>
    %180 = math.exp %179 : vector<8x96xf32>
    %cst_34 = arith.constant 1.000000e+00 : f32
    %181 = vector.broadcast %cst_34 : f32 to vector<8x96xf32>
    %182 = arith.addf %181, %180 : vector<8x96xf32>
    %183 = arith.divf %181, %182 : vector<8x96xf32>
    %184 = vector.extract_strided_slice %177 {offsets = [0, 96], sizes = [8, 32], strides = [1, 1]} : vector<8x128xf32> to vector<8x32xf32>
    %185 = math.tanh %184 : vector<8x32xf32>
    %186 = vector.extract_strided_slice %183 {offsets = [0, 0], sizes = [8, 32], strides = [1, 1]} : vector<8x96xf32> to vector<8x32xf32>
    %187 = vector.extract_strided_slice %183 {offsets = [0, 32], sizes = [8, 32], strides = [1, 1]} : vector<8x96xf32> to vector<8x32xf32>
    %188 = vector.extract_strided_slice %183 {offsets = [0, 64], sizes = [8, 32], strides = [1, 1]} : vector<8x96xf32> to vector<8x32xf32>
    %189 = arith.mulf %187, %167 : vector<8x32xf32>
    %190 = arith.mulf %186, %185 : vector<8x32xf32>
    %191 = arith.addf %189, %190 : vector<8x32xf32>
    %192 = math.tanh %191 : vector<8x32xf32>
    %193 = arith.mulf %188, %192 : vector<8x32xf32>
    %194 = arith.addf %170, %193 : vector<8x32xf32>
    %c8_i32 = arith.constant 8 : i32
    %c0_35 = arith.constant 0 : index
    %c0_36 = arith.constant 0 : index
    %195 = vector.load %arg3[%c0_35, %c0_36] : memref<32x128xf32, #tpu.memory_space<vmem>>, vector<32x128xf32>
    %cst_37 = arith.constant dense<0.000000e+00> : vector<8x128xf32>
    %196 = tpu.matmul %194, %195, %cst_37 {dimension_numbers = #tpu.dot_dimension_numbers<[1], [0], [0], [1], [0, 0, 1, 1], [], []>} : vector<8x32xf32>, vector<32x128xf32>, vector<8x128xf32> -> vector<8x128xf32>
    %c0_38 = arith.constant 0 : index
    %c0_39 = arith.constant 0 : index
    %197 = vector.load %arg4[%c0_38, %c0_39] : memref<1x128xf32, #tpu.memory_space<vmem>>, vector<1x128xf32>
    %198 = vector.broadcast %197 : vector<1x128xf32> to vector<8x128xf32>
    %199 = arith.addf %196, %198 : vector<8x128xf32>
    %c0_40 = arith.constant 0 : index
    %c0_41 = arith.constant 0 : index
    %200 = vector.load %arg5[%c0_40, %c0_41] : memref<8x128xf32, #tpu.memory_space<vmem>>, vector<8x128xf32>
    tpu.vector_store %arg5[%c0_40, %c0_41], %199 {strides = array<i32>} : memref<8x128xf32, #tpu.memory_space<vmem>>, vector<8x128xf32>,
    return
  }
}

</mosaic_0001>

<llo_original>
// kernel: tpu_custom_call.1
$region0: #{tpu_custom_call.1}
  #allocation0 [shape = 'u32[]', space=smem, size = 0x4, offset = 0x4, fixed_abs, tag = 'smem constant byte address 0x4 - core index']
  #allocation1 [shape = 'u32[144,128]{1,0:T(1,128)}', space=vmem, size = 0x12000, scoped, tag = 'internal scratch']
  %s0 = inlined_call_operand.hbm [shape: f32[8,8,16], index: 0, kind: input, shape index: {}]
  %s1 = inlined_call_operand.hbm [shape: f32[48,128], index: 1, kind: input, shape index: {}]
  %s2 = inlined_call_operand.vmem [shape: f32[1,128], index: 2, kind: input, shape index: {}]
  %s3 = inlined_call_operand.hbm [shape: f32[32,128], index: 3, kind: input, shape index: {}]
  %s4 = inlined_call_operand.vmem [shape: f32[1,128], index: 4, kind: input, shape index: {}]
  %s5 = inlined_call_operand.hbm [shape: f32[8,128], index: 5, kind: output, shape index: {}]
  %s6 = sld [smem:[#allocation0]]
  $region42: #{tpu_custom_call.1} parent=0
    _
  %s8 = ssub.s32 1, %s6
  %s9 = scalar_select 0, %s8, %s6
  $region1: #{tpu_custom_call.1} parent=0
    #allocation2 [shape = 'u8[32768]{0}', space=vmem, size = 0x8000, scoped, tag = 'input window, operand 0, single buffered']
    #allocation3 [shape = 's32[1]{0}', space=sflag, size = 0x4, scoped, tag = 'scoped memory for tpu_custom_call.1']
    #allocation4 [shape = 's32[1]{0}', space=sflag, size = 0x4, scoped, tag = 'scoped memory for tpu_custom_call.1']
    #allocation5 [shape = 'u8[24576]{0}', space=vmem, size = 0x6000, scoped, tag = 'input window, operand 1, single buffered']
    #allocation6 [shape = 's32[1]{0}', space=sflag, size = 0x4, scoped, tag = 'scoped memory for tpu_custom_call.1']
    #allocation7 [shape = 'u8[16384]{0}', space=vmem, size = 0x4000, scoped, tag = 'input window, operand 3, single buffered']
    #allocation8 [shape = 'u8[4096]{0}', space=vmem, size = 0x1000, scoped, tag = 'output window, operand 0, single buffered']
    %10 = vsyncpa [#allocation3], 0
    %11 = vsyncpa [#allocation6], 0
    %12 = vsyncpa [#allocation4], 0
    // Predicated region
    $region2: #{tpu_custom_call.1} parent=1 // pred_check
      _
    $region3: #{tpu_custom_call.1} parent=1 // pred_check_branch
      %14 = sbr.rel (0) target = $region5
    $region4: #{tpu_custom_call.1} parent=1 // pred_region
      %s16 = ssub.s32 1024, 1024
      %17 = vsyncadd [#allocation3], %s16
      %s18 = sshll.u32 [#allocation2], 4
      %s19 = int_to_ptr.vmem [resolvable:$true] %s18
      %24 = dma.hbm_to_vmem [thread:$0]  %s0, 1024, %s19, [#allocation3], 128, 128, 8
    $region5: #{tpu_custom_call.1} parent=1 // pred_fallthru
      _
    // Predicated region
    $region6: #{tpu_custom_call.1} parent=1 // pred_check
      _
    $region7: #{tpu_custom_call.1} parent=1 // pred_check_branch
      %26 = sbr.rel (0) target = $region9
    $region8: #{tpu_custom_call.1} parent=1 // pred_region
      %s28 = ssub.s32 768, 768
      %29 = vsyncadd [#allocation6], %s28
      %s30 = sshll.u32 [#allocation5], 4
      %s31 = int_to_ptr.vmem [resolvable:$true] %s30
      %36 = dma.hbm_to_vmem [thread:$0]  %s1, 768, %s31, [#allocation6], 128, 128, 8
    $region9: #{tpu_custom_call.1} parent=1 // pred_fallthru
      _
    // Predicated region
    $region10: #{tpu_custom_call.1} parent=1 // pred_check
      _
    $region11: #{tpu_custom_call.1} parent=1 // pred_check_branch
      %38 = sbr.rel (0) target = $region13
    $region12: #{tpu_custom_call.1} parent=1 // pred_region
      _
    $region13: #{tpu_custom_call.1} parent=1 // pred_fallthru
      _
    // Predicated region
    $region14: #{tpu_custom_call.1} parent=1 // pred_check
      _
    $region15: #{tpu_custom_call.1} parent=1 // pred_check_branch
      %40 = sbr.rel (0) target = $region17
    $region16: #{tpu_custom_call.1} parent=1 // pred_region
      %s42 = ssub.s32 512, 512
      %43 = vsyncadd [#allocation6], %s42
      %s44 = sshll.u32 [#allocation7], 4
      %s45 = int_to_ptr.vmem [resolvable:$true] %s44
      %50 = dma.hbm_to_vmem [thread:$0]  %s3, 512, %s45, [#allocation6], 128, 128, 8
    $region17: #{tpu_custom_call.1} parent=1 // pred_fallthru
      _
    // Predicated region
    $region18: #{tpu_custom_call.1} parent=1 // pred_check
      _
    $region19: #{tpu_custom_call.1} parent=1 // pred_check_branch
      %52 = sbr.rel (0) target = $region21
    $region20: #{tpu_custom_call.1} parent=1 // pred_region
      _
    $region21: #{tpu_custom_call.1} parent=1 // pred_fallthru
      _
    // Predicated region
    $region22: #{tpu_custom_call.1} parent=1 // pred_check
      _
    $region23: #{tpu_custom_call.1} parent=1 // pred_check_branch
      %54 = sbr.rel (0) target = $region25
    $region24: #{tpu_custom_call.1} parent=1 // pred_region
      %55 = dma.done [#allocation3], 1024
    $region25: #{tpu_custom_call.1} parent=1 // pred_fallthru
      _
    // Predicated region
    $region26: #{tpu_custom_call.1} parent=1 // pred_check
      _
    $region27: #{tpu_custom_call.1} parent=1 // pred_check_branch
      %57 = sbr.rel (0) target = $region29
    $region28: #{tpu_custom_call.1} parent=1 // pred_region
      %58 = dma.done [#allocation6], 768
    $region29: #{tpu_custom_call.1} parent=1 // pred_fallthru
      _
    // Predicated region
    $region30: #{tpu_custom_call.1} parent=1 // pred_check
      _
    $region31: #{tpu_custom_call.1} parent=1 // pred_check_branch
      %60 = sbr.rel (0) target = $region33
    $region32: #{tpu_custom_call.1} parent=1 // pred_region
      %61 = dma.done [#allocation6], 512
    $region33: #{tpu_custom_call.1} parent=1 // pred_fallthru
      _
    %v62 = vld [vmem:[#allocation5] sm:$0xff]
    %v63 = vld [vmem:[#allocation5 + $0x8] sm:$0xff]
    %v64 = vld [vmem:[#allocation5 + $0x10] sm:$0xff]
    %v65 = vld [vmem:[#allocation5 + $0x18] sm:$0xff]
    %v66 = vld [vmem:[#allocation5 + $0x20] sm:$0xff]
    %v67 = vld [vmem:[#allocation5 + $0x28] sm:$0xff]
    %v68 = vld [vmem:[%s2] sm:$0x1]
    %v69 = vld [vmem:[#allocation2] sm:$0xff]
    %vm70 = vcmask 130048
    %v71 = vsel %vm70, %v69, 0.0
    %v73 = vlaneseq
    %v74 = vshrl.u32 %v73, 7
    %v75 = vsub.s32 0, %v74
    %v76 = vrot.slane %v68, %v75
    %vm78 = vcmask 392192
    %v80 = vsel %vm78, %v71, 0
    %82 = vmatprep.subr.mxu0 0.0
    %83 = vmatpush1.msra.mxu0 0.0
    %84 = vmatprep.subr.mxu0 0.0
    %85 = vmatpush1.msra.mxu0 0.0
    %86 = vmatprep.subr.mxu0 0.0
    %87 = vmatpush1.msra.mxu0 0.0
    %88 = vmatprep.subr.mxu0 0.0
    %89 = vmatpush1.msra.mxu0 0.0
    %90 = vmatprep.subr.mxu0 0.0
    %91 = vmatpush1.msra.mxu0 0.0
    %92 = vmatprep.subr.mxu0 0.0
    %93 = vmatpush1.msra.mxu0 0.0
    %94 = vmatprep.subr.mxu0 0.0
    %95 = vmatpush1.msra.mxu0 0.0
    %96 = vmatprep.subr.mxu0 0.0
    %97 = vmatpush1.msra.mxu0 0.0
    %98 = vmatprep.subr.mxu0 0.0
    %99 = vmatpush1.msra.mxu0 0.0
    %100 = vmatprep.subr.mxu0 0.0
    %101 = vmatpush1.msra.mxu0 0.0
    %102 = vmatprep.subr.mxu0 0.0
    %103 = vmatpush1.msra.mxu0 %v67
    %104 = vmatprep.subr.mxu0 0.0
    %105 = vmatpush1.msra.mxu0 %v66
    %106 = vmatprep.subr.mxu0 0.0
    %107 = vmatpush1.msra.mxu0 %v65
    %108 = vmatprep.subr.mxu0 0.0
    %109 = vmatpush1.msra.mxu0 %v64
    %110 = vmatprep.subr.mxu0 0.0
    %111 = vmatpush1.msra.mxu0 %v63
    %112 = vmatprep.subr.mxu0 0.0
    %113 = vmatpush1.msra.mxu0 %v62
    %114 = vmatprep.subr.mxu0 0.0
    %115 = vmatpush2.msra.mxu0 0.0
    %116 = vmatprep.subr.mxu0 0.0
    %117 = vmatpush2.msra.mxu0 0.0
    %118 = vmatprep.subr.mxu0 0.0
    %119 = vmatpush2.msra.mxu0 0.0
    %120 = vmatprep.subr.mxu0 0.0
    %121 = vmatpush2.msra.mxu0 0.0
    %122 = vmatprep.subr.mxu0 0.0
    %123 = vmatpush2.msra.mxu0 0.0
    %124 = vmatprep.subr.mxu0 0.0
    %125 = vmatpush2.msra.mxu0 0.0
    %126 = vmatprep.subr.mxu0 0.0
    %127 = vmatpush2.msra.mxu0 0.0
    %128 = vmatprep.subr.mxu0 0.0
    %129 = vmatpush2.msra.mxu0 0.0
    %130 = vmatprep.subr.mxu0 0.0
    %131 = vmatpush2.msra.mxu0 0.0
    %132 = vmatprep.subr.mxu0 0.0
    %133 = vmatpush2.msra.mxu0 0.0
    %134 = vmatprep.subr.mxu0 0.0
    %135 = vmatpush2.msra.mxu0 0.0
    %136 = vmatprep.subr.mxu0 0.0
    %137 = vmatpush2.msra.mxu0 0.0
    %138 = vmatprep.subr.mxu0 0.0
    %139 = vmatpush2.msra.mxu0 0.0
    %140 = vmatprep.subr.mxu0 0.0
    %141 = vmatpush2.msra.mxu0 0.0
    %142 = vmatprep.subr.mxu0 0.0
    %143 = vmatpush2.msra.mxu0 0.0
    %144 = vmatprep.subr.mxu0 0.0
    %145 = vmatpush2.msra.mxu0 0.0
    %146 = vmatprep.mubr.f32.mxu0 0.0
    %147 = vmatmul.mubr.f32.gmra.mxu0 %v80
    %v148 = vpop.f32.mrf.mxu0
    %v149 = vadd.f32 %v76, %v148
    %v150 = vpop.f32.mrf.mxu0
    %151 = vdwg.mxu0
    %v152 = vxor.u32 %v149, 2147483648
    %v153 = vmul.f32 %v152, 1.442695
    %v154 = vpow.pop %v153
    %v155 = vadd.f32 %v154, 1.0
    %v156 = vrcp.pop %v155
    %v157 = vmul.f32 1.0, %v156
    %v158 = vtanh.pop %v149
    %v159 = vmul.f32 %v157, 0.0
    %161 = vrot.lane.b32.xlu0 %v158, 32
    %v162 = vpop.permute.xlu0 %161
    %v164 = vmul.f32 %v157, %v162
    %166 = vrot.lane.b32.xlu0 %v164, 32
    %v167 = vpop.permute.xlu0 %166
    %v169 = vadd.f32 %v159, %v167
    %v170 = vtanh.pop %v169
    %172 = vrot.lane.b32.xlu0 %v170, 32
    %v173 = vpop.permute.xlu0 %172
    %v175 = vmul.f32 %v157, %v173
    %v176 = vadd.f32 %v175, 0.0
    %s177 = scalar_lea.vmem [#allocation2], 8
    %v178 = vld [vmem:[%s177] sm:$0xff]
    %180 = vrot.lane.b32.xlu0 %v175, 80
    %v181 = vpop.permute.xlu0 %180
    %v183 = vsel %vm70, %v178, %v181
    %v185 = vsel %vm78, %v183, 0
    %187 = vmatprep.subr.mxu0 0.0
    %188 = vmatpush1.msra.mxu0 0.0
    %189 = vmatprep.subr.mxu0 0.0
    %190 = vmatpush1.msra.mxu0 0.0
    %191 = vmatprep.subr.mxu0 0.0
    %192 = vmatpush1.msra.mxu0 0.0
    %193 = vmatprep.subr.mxu0 0.0
    %194 = vmatpush1.msra.mxu0 0.0
    %195 = vmatprep.subr.mxu0 0.0
    %196 = vmatpush1.msra.mxu0 0.0
    %197 = vmatprep.subr.mxu0 0.0
    %198 = vmatpush1.msra.mxu0 0.0
    %199 = vmatprep.subr.mxu0 0.0
    %200 = vmatpush1.msra.mxu0 0.0
    %201 = vmatprep.subr.mxu0 0.0
    %202 = vmatpush1.msra.mxu0 0.0
    %203 = vmatprep.subr.mxu0 0.0
    %204 = vmatpush1.msra.mxu0 0.0
    %205 = vmatprep.subr.mxu0 0.0
    %206 = vmatpush1.msra.mxu0 0.0
    %207 = vmatprep.subr.mxu0 0.0
    %208 = vmatpush1.msra.mxu0 %v67
    %209 = vmatprep.subr.mxu0 0.0
    %210 = vmatpush1.msra.mxu0 %v66
    %211 = vmatprep.subr.mxu0 0.0
    %212 = vmatpush1.msra.mxu0 %v65
    %213 = vmatprep.subr.mxu0 0.0
    %214 = vmatpush1.msra.mxu0 %v64
    %215 = vmatprep.subr.mxu0 0.0
    %216 = vmatpush1.msra.mxu0 %v63
    %217 = vmatprep.subr.mxu0 0.0
    %218 = vmatpush1.msra.mxu0 %v62
    %219 = vmatprep.subr.mxu0 0.0
    %220 = vmatpush2.msra.mxu0 0.0
    %221 = vmatprep.subr.mxu0 0.0
    %222 = vmatpush2.msra.mxu0 0.0
    %223 = vmatprep.subr.mxu0 0.0
    %224 = vmatpush2.msra.mxu0 0.0
    %225 = vmatprep.subr.mxu0 0.0
    %226 = vmatpush2.msra.mxu0 0.0
    %227 = vmatprep.subr.mxu0 0.0
    %228 = vmatpush2.msra.mxu0 0.0
    %229 = vmatprep.subr.mxu0 0.0
    %230 = vmatpush2.msra.mxu0 0.0
    %231 = vmatprep.subr.mxu0 0.0
    %232 = vmatpush2.msra.mxu0 0.0
    %233 = vmatprep.subr.mxu0 0.0
    %234 = vmatpush2.msra.mxu0 0.0
    %235 = vmatprep.subr.mxu0 0.0
    %236 = vmatpush2.msra.mxu0 0.0
    %237 = vmatprep.subr.mxu0 0.0
    %238 = vmatpush2.msra.mxu0 0.0
    %239 = vmatprep.subr.mxu0 0.0
    %240 = vmatpush2.msra.mxu0 0.0
    %241 = vmatprep.subr.mxu0 0.0
    %242 = vmatpush2.msra.mxu0 0.0
    %243 = vmatprep.subr.mxu0 0.0
    %244 = vmatpush2.msra.mxu0 0.0
    %245 = vmatprep.subr.mxu0 0.0
    %246 = vmatpush2.msra.mxu0 0.0
    %247 = vmatprep.subr.mxu0 0.0
    %248 = vmatpush2.msra.mxu0 0.0
    %249 = vmatprep.subr.mxu0 0.0
    %250 = vmatpush2.msra.mxu0 0.0
    %251 = vmatprep.mubr.f32.mxu0 0.0
    %252 = vmatmul.mubr.f32.gmra.mxu0 %v185
    %v253 = vpop.f32.mrf.mxu0
    %v254 = vadd.f32 %v76, %v253
    %v255 = vpop.f32.mrf.mxu0
    %256 = vdwg.mxu0
    %v257 = vxor.u32 %v254, 2147483648
    %v258 = vmul.f32 %v257, 1.442695
    %v259 = vpow.pop %v258
    %v260 = vadd.f32 %v259, 1.0
    %v261 = vrcp.pop %v260
    %v262 = vmul.f32 1.0, %v261
    %v263 = vtanh.pop %v254
    %v264 = vmul.f32 %v262, %v169
    %266 = vrot.lane.b32.xlu0 %v263, 32
    %v267 = vpop.permute.xlu0 %266
    %v269 = vmul.f32 %v262, %v267
    %271 = vrot.lane.b32.xlu0 %v269, 32
    %v272 = vpop.permute.xlu0 %271
    %v274 = vadd.f32 %v264, %v272
    %v275 = vtanh.pop %v274
    %277 = vrot.lane.b32.xlu0 %v275, 32
    %v278 = vpop.permute.xlu0 %277
    %v280 = vmul.f32 %v262, %v278
    %v281 = vadd.f32 %v176, %v280
    %s282 = scalar_lea.vmem [#allocation2], 16
    %v283 = vld [vmem:[%s282] sm:$0xff]
    %285 = vrot.lane.b32.xlu0 %v280, 80
    %v286 = vpop.permute.xlu0 %285
    %v288 = vsel %vm70, %v283, %v286
    %v290 = vsel %vm78, %v288, 0
    %292 = vmatprep.subr.mxu0 0.0
    %293 = vmatpush1.msra.mxu0 0.0
    %294 = vmatprep.subr.mxu0 0.0
    %295 = vmatpush1.msra.mxu0 0.0
    %296 = vmatprep.subr.mxu0 0.0
    %297 = vmatpush1.msra.mxu0 0.0
    %298 = vmatprep.subr.mxu0 0.0
    %299 = vmatpush1.msra.mxu0 0.0
    %300 = vmatprep.subr.mxu0 0.0
    %301 = vmatpush1.msra.mxu0 0.0
    %302 = vmatprep.subr.mxu0 0.0
    %303 = vmatpush1.msra.mxu0 0.0
    %304 = vmatprep.subr.mxu0 0.0
    %305 = vmatpush1.msra.mxu0 0.0
    %306 = vmatprep.subr.mxu0 0.0
    %307 = vmatpush1.msra.mxu0 0.0
    %308 = vmatprep.subr.mxu0 0.0
    %309 = vmatpush1.msra.mxu0 0.0
    %310 = vmatprep.subr.mxu0 0.0
    %311 = vmatpush1.msra.mxu0 0.0
    %312 = vmatprep.subr.mxu0 0.0
    %313 = vmatpush1.msra.mxu0 %v67
    %314 = vmatprep.subr.mxu0 0.0
    %315 = vmatpush1.msra.mxu0 %v66
    %316 = vmatprep.subr.mxu0 0.0
    %317 = vmatpush1.msra.mxu0 %v65
    %318 = vmatprep.subr.mxu0 0.0
    %319 = vmatpush1.msra.mxu0 %v64
    %320 = vmatprep.subr.mxu0 0.0
    %321 = vmatpush1.msra.mxu0 %v63
    %322 = vmatprep.subr.mxu0 0.0
    %323 = vmatpush1.msra.mxu0 %v62
    %324 = vmatprep.subr.mxu0 0.0
    %325 = vmatpush2.msra.mxu0 0.0
    %326 = vmatprep.subr.mxu0 0.0
    %327 = vmatpush2.msra.mxu0 0.0
    %328 = vmatprep.subr.mxu0 0.0
    %329 = vmatpush2.msra.mxu0 0.0
    %330 = vmatprep.subr.mxu0 0.0
    %331 = vmatpush2.msra.mxu0 0.0
    %332 = vmatprep.subr.mxu0 0.0
    %333 = vmatpush2.msra.mxu0 0.0
    %334 = vmatprep.subr.mxu0 0.0
    %335 = vmatpush2.msra.mxu0 0.0
    %336 = vmatprep.subr.mxu0 0.0
    %337 = vmatpush2.msra.mxu0 0.0
    %338 = vmatprep.subr.mxu0 0.0
    %339 = vmatpush2.msra.mxu0 0.0
    %340 = vmatprep.subr.mxu0 0.0
    %341 = vmatpush2.msra.mxu0 0.0
    %342 = vmatprep.subr.mxu0 0.0
    %343 = vmatpush2.msra.mxu0 0.0
    %344 = vmatprep.subr.mxu0 0.0
    %345 = vmatpush2.msra.mxu0 0.0
    %346 = vmatprep.subr.mxu0 0.0
    %347 = vmatpush2.msra.mxu0 0.0
    %348 = vmatprep.subr.mxu0 0.0
    %349 = vmatpush2.msra.mxu0 0.0
    %350 = vmatprep.subr.mxu0 0.0
    %351 = vmatpush2.msra.mxu0 0.0
    %352 = vmatprep.subr.mxu0 0.0
    %353 = vmatpush2.msra.mxu0 0.0
    %354 = vmatprep.subr.mxu0 0.0
    %355 = vmatpush2.msra.mxu0 0.0
    %356 = vmatprep.mubr.f32.mxu0 0.0
    %357 = vmatmul.mubr.f32.gmra.mxu0 %v290
    %v358 = vpop.f32.mrf.mxu0
    %v359 = vadd.f32 %v76, %v358
    %v360 = vpop.f32.mrf.mxu0
    %361 = vdwg.mxu0
    %v362 = vxor.u32 %v359, 2147483648
    %v363 = vmul.f32 %v362, 1.442695
    %v364 = vpow.pop %v363
    %v365 = vadd.f32 %v364, 1.0
    %v366 = vrcp.pop %v365
    %v367 = vmul.f32 1.0, %v366
    %v368 = vtanh.pop %v359
    %v369 = vmul.f32 %v367, %v274
    %371 = vrot.lane.b32.xlu0 %v368, 32
    %v372 = vpop.permute.xlu0 %371
    %v374 = vmul.f32 %v367, %v372
    %376 = vrot.lane.b32.xlu0 %v374, 32
    %v377 = vpop.permute.xlu0 %376
    %v379 = vadd.f32 %v369, %v377
    %v380 = vtanh.pop %v379
    %382 = vrot.lane.b32.xlu0 %v380, 32
    %v383 = vpop.permute.xlu0 %382
    %v385 = vmul.f32 %v367, %v383
    %v386 = vadd.f32 %v281, %v385
    %s387 = scalar_lea.vmem [#allocation2], 24
    %v388 = vld [vmem:[%s387] sm:$0xff]
    %390 = vrot.lane.b32.xlu0 %v385, 80
    %v391 = vpop.permute.xlu0 %390
    %v393 = vsel %vm70, %v388, %v391
    %v395 = vsel %vm78, %v393, 0
    %397 = vmatprep.subr.mxu0 0.0
    %398 = vmatpush1.msra.mxu0 0.0
    %399 = vmatprep.subr.mxu0 0.0
    %400 = vmatpush1.msra.mxu0 0.0
    %401 = vmatprep.subr.mxu0 0.0
    %402 = vmatpush1.msra.mxu0 0.0
    %403 = vmatprep.subr.mxu0 0.0
    %404 = vmatpush1.msra.mxu0 0.0
    %405 = vmatprep.subr.mxu0 0.0
    %406 = vmatpush1.msra.mxu0 0.0
    %407 = vmatprep.subr.mxu0 0.0
    %408 = vmatpush1.msra.mxu0 0.0
    %409 = vmatprep.subr.mxu0 0.0
    %410 = vmatpush1.msra.mxu0 0.0
    %411 = vmatprep.subr.mxu0 0.0
    %412 = vmatpush1.msra.mxu0 0.0
    %413 = vmatprep.subr.mxu0 0.0
    %414 = vmatpush1.msra.mxu0 0.0
    %415 = vmatprep.subr.mxu0 0.0
    %416 = vmatpush1.msra.mxu0 0.0
    %417 = vmatprep.subr.mxu0 0.0
    %418 = vmatpush1.msra.mxu0 %v67
    %419 = vmatprep.subr.mxu0 0.0
    %420 = vmatpush1.msra.mxu0 %v66
    %421 = vmatprep.subr.mxu0 0.0
    %422 = vmatpush1.msra.mxu0 %v65
    %423 = vmatprep.subr.mxu0 0.0
    %424 = vmatpush1.msra.mxu0 %v64
    %425 = vmatprep.subr.mxu0 0.0
    %426 = vmatpush1.msra.mxu0 %v63
    %427 = vmatprep.subr.mxu0 0.0
    %428 = vmatpush1.msra.mxu0 %v62
    %429 = vmatprep.subr.mxu0 0.0
    %430 = vmatpush2.msra.mxu0 0.0
    %431 = vmatprep.subr.mxu0 0.0
    %432 = vmatpush2.msra.mxu0 0.0
    %433 = vmatprep.subr.mxu0 0.0
    %434 = vmatpush2.msra.mxu0 0.0
    %435 = vmatprep.subr.mxu0 0.0
    %436 = vmatpush2.msra.mxu0 0.0
    %437 = vmatprep.subr.mxu0 0.0
    %438 = vmatpush2.msra.mxu0 0.0
    %439 = vmatprep.subr.mxu0 0.0
    %440 = vmatpush2.msra.mxu0 0.0
    %441 = vmatprep.subr.mxu0 0.0
    %442 = vmatpush2.msra.mxu0 0.0
    %443 = vmatprep.subr.mxu0 0.0
    %444 = vmatpush2.msra.mxu0 0.0
    %445 = vmatprep.subr.mxu0 0.0
    %446 = vmatpush2.msra.mxu0 0.0
    %447 = vmatprep.subr.mxu0 0.0
    %448 = vmatpush2.msra.mxu0 0.0
    %449 = vmatprep.subr.mxu0 0.0
    %450 = vmatpush2.msra.mxu0 0.0
    %451 = vmatprep.subr.mxu0 0.0
    %452 = vmatpush2.msra.mxu0 0.0
    %453 = vmatprep.subr.mxu0 0.0
    %454 = vmatpush2.msra.mxu0 0.0
    %455 = vmatprep.subr.mxu0 0.0
    %456 = vmatpush2.msra.mxu0 0.0
    %457 = vmatprep.subr.mxu0 0.0
    %458 = vmatpush2.msra.mxu0 0.0
    %459 = vmatprep.subr.mxu0 0.0
    %460 = vmatpush2.msra.mxu0 0.0
    %461 = vmatprep.mubr.f32.mxu0 0.0
    %462 = vmatmul.mubr.f32.gmra.mxu0 %v395
    %v463 = vpop.f32.mrf.mxu0
    %v464 = vadd.f32 %v76, %v463
    %v465 = vpop.f32.mrf.mxu0
    %466 = vdwg.mxu0
    %v467 = vxor.u32 %v464, 2147483648
    %v468 = vmul.f32 %v467, 1.442695
    %v469 = vpow.pop %v468
    %v470 = vadd.f32 %v469, 1.0
    %v471 = vrcp.pop %v470
    %v472 = vmul.f32 1.0, %v471
    %v473 = vtanh.pop %v464
    %v474 = vmul.f32 %v472, %v379
    %476 = vrot.lane.b32.xlu0 %v473, 32
    %v477 = vpop.permute.xlu0 %476
    %v479 = vmul.f32 %v472, %v477
    %481 = vrot.lane.b32.xlu0 %v479, 32
    %v482 = vpop.permute.xlu0 %481
    %v484 = vadd.f32 %v474, %v482
    %v485 = vtanh.pop %v484
    %487 = vrot.lane.b32.xlu0 %v485, 32
    %v488 = vpop.permute.xlu0 %487
    %v490 = vmul.f32 %v472, %v488
    %v491 = vadd.f32 %v386, %v490
    %s492 = scalar_lea.vmem [#allocation2], 32
    %v493 = vld [vmem:[%s492] sm:$0xff]
    %495 = vrot.lane.b32.xlu0 %v490, 80
    %v496 = vpop.permute.xlu0 %495
    %v498 = vsel %vm70, %v493, %v496
    %v500 = vsel %vm78, %v498, 0
    %502 = vmatprep.subr.mxu0 0.0
    %503 = vmatpush1.msra.mxu0 0.0
    %504 = vmatprep.subr.mxu0 0.0
    %505 = vmatpush1.msra.mxu0 0.0
    %506 = vmatprep.subr.mxu0 0.0
    %507 = vmatpush1.msra.mxu0 0.0
    %508 = vmatprep.subr.mxu0 0.0
    %509 = vmatpush1.msra.mxu0 0.0
    %510 = vmatprep.subr.mxu0 0.0
    %511 = vmatpush1.msra.mxu0 0.0
    %512 = vmatprep.subr.mxu0 0.0
    %513 = vmatpush1.msra.mxu0 0.0
    %514 = vmatprep.subr.mxu0 0.0
    %515 = vmatpush1.msra.mxu0 0.0
    %516 = vmatprep.subr.mxu0 0.0
    %517 = vmatpush1.msra.mxu0 0.0
    %518 = vmatprep.subr.mxu0 0.0
    %519 = vmatpush1.msra.mxu0 0.0
    %520 = vmatprep.subr.mxu0 0.0
    %521 = vmatpush1.msra.mxu0 0.0
    %522 = vmatprep.subr.mxu0 0.0
    %523 = vmatpush1.msra.mxu0 %v67
    %524 = vmatprep.subr.mxu0 0.0
    %525 = vmatpush1.msra.mxu0 %v66
    %526 = vmatprep.subr.mxu0 0.0
    %527 = vmatpush1.msra.mxu0 %v65
    %528 = vmatprep.subr.mxu0 0.0
    %529 = vmatpush1.msra.mxu0 %v64
    %530 = vmatprep.subr.mxu0 0.0
    %531 = vmatpush1.msra.mxu0 %v63
    %532 = vmatprep.subr.mxu0 0.0
    %533 = vmatpush1.msra.mxu0 %v62
    %534 = vmatprep.subr.mxu0 0.0
    %535 = vmatpush2.msra.mxu0 0.0
    %536 = vmatprep.subr.mxu0 0.0
    %537 = vmatpush2.msra.mxu0 0.0
    %538 = vmatprep.subr.mxu0 0.0
    %539 = vmatpush2.msra.mxu0 0.0
    %540 = vmatprep.subr.mxu0 0.0
    %541 = vmatpush2.msra.mxu0 0.0
    %542 = vmatprep.subr.mxu0 0.0
    %543 = vmatpush2.msra.mxu0 0.0
    %544 = vmatprep.subr.mxu0 0.0
    %545 = vmatpush2.msra.mxu0 0.0
    %546 = vmatprep.subr.mxu0 0.0
    %547 = vmatpush2.msra.mxu0 0.0
    %548 = vmatprep.subr.mxu0 0.0
    %549 = vmatpush2.msra.mxu0 0.0
    %550 = vmatprep.subr.mxu0 0.0
    %551 = vmatpush2.msra.mxu0 0.0
    %552 = vmatprep.subr.mxu0 0.0
    %553 = vmatpush2.msra.mxu0 0.0
    %554 = vmatprep.subr.mxu0 0.0
    %555 = vmatpush2.msra.mxu0 0.0
    %556 = vmatprep.subr.mxu0 0.0
    %557 = vmatpush2.msra.mxu0 0.0
    %558 = vmatprep.subr.mxu0 0.0
    %559 = vmatpush2.msra.mxu0 0.0
    %560 = vmatprep.subr.mxu0 0.0
    %561 = vmatpush2.msra.mxu0 0.0
    %562 = vmatprep.subr.mxu0 0.0
    %563 = vmatpush2.msra.mxu0 0.0
    %564 = vmatprep.subr.mxu0 0.0
    %565 = vmatpush2.msra.mxu0 0.0
    %566 = vmatprep.mubr.f32.mxu0 0.0
    %567 = vmatmul.mubr.f32.gmra.mxu0 %v500
    %v568 = vpop.f32.mrf.mxu0
    %v569 = vadd.f32 %v76, %v568
    %v570 = vpop.f32.mrf.mxu0
    %571 = vdwg.mxu0
    %v572 = vxor.u32 %v569, 2147483648
    %v573 = vmul.f32 %v572, 1.442695
    %v574 = vpow.pop %v573
    %v575 = vadd.f32 %v574, 1.0
    %v576 = vrcp.pop %v575
    %v577 = vmul.f32 1.0, %v576
    %v578 = vtanh.pop %v569
    %v579 = vmul.f32 %v577, %v484
    %581 = vrot.lane.b32.xlu0 %v578, 32
    %v582 = vpop.permute.xlu0 %581
    %v584 = vmul.f32 %v577, %v582
    %586 = vrot.lane.b32.xlu0 %v584, 32
    %v587 = vpop.permute.xlu0 %586
    %v589 = vadd.f32 %v579, %v587
    %v590 = vtanh.pop %v589
    %592 = vrot.lane.b32.xlu0 %v590, 32
    %v593 = vpop.permute.xlu0 %592
    %v595 = vmul.f32 %v577, %v593
    %v596 = vadd.f32 %v491, %v595
    %s597 = scalar_lea.vmem [#allocation2], 40
    %v598 = vld [vmem:[%s597] sm:$0xff]
    %600 = vrot.lane.b32.xlu0 %v595, 80
    %v601 = vpop.permute.xlu0 %600
    %v603 = vsel %vm70, %v598, %v601
    %v605 = vsel %vm78, %v603, 0
    %607 = vmatprep.subr.mxu0 0.0
    %608 = vmatpush1.msra.mxu0 0.0
    %609 = vmatprep.subr.mxu0 0.0
    %610 = vmatpush1.msra.mxu0 0.0
    %611 = vmatprep.subr.mxu0 0.0
    %612 = vmatpush1.msra.mxu0 0.0
    %613 = vmatprep.subr.mxu0 0.0
    %614 = vmatpush1.msra.mxu0 0.0
    %615 = vmatprep.subr.mxu0 0.0
    %616 = vmatpush1.msra.mxu0 0.0
    %617 = vmatprep.subr.mxu0 0.0
    %618 = vmatpush1.msra.mxu0 0.0
    %619 = vmatprep.subr.mxu0 0.0
    %620 = vmatpush1.msra.mxu0 0.0
    %621 = vmatprep.subr.mxu0 0.0
    %622 = vmatpush1.msra.mxu0 0.0
    %623 = vmatprep.subr.mxu0 0.0
    %624 = vmatpush1.msra.mxu0 0.0
    %625 = vmatprep.subr.mxu0 0.0
    %626 = vmatpush1.msra.mxu0 0.0
    %627 = vmatprep.subr.mxu0 0.0
    %628 = vmatpush1.msra.mxu0 %v67
    %629 = vmatprep.subr.mxu0 0.0
    %630 = vmatpush1.msra.mxu0 %v66
    %631 = vmatprep.subr.mxu0 0.0
    %632 = vmatpush1.msra.mxu0 %v65
    %633 = vmatprep.subr.mxu0 0.0
    %634 = vmatpush1.msra.mxu0 %v64
    %635 = vmatprep.subr.mxu0 0.0
    %636 = vmatpush1.msra.mxu0 %v63
    %637 = vmatprep.subr.mxu0 0.0
    %638 = vmatpush1.msra.mxu0 %v62
    %639 = vmatprep.subr.mxu0 0.0
    %640 = vmatpush2.msra.mxu0 0.0
    %641 = vmatprep.subr.mxu0 0.0
    %642 = vmatpush2.msra.mxu0 0.0
    %643 = vmatprep.subr.mxu0 0.0
    %644 = vmatpush2.msra.mxu0 0.0
    %645 = vmatprep.subr.mxu0 0.0
    %646 = vmatpush2.msra.mxu0 0.0
    %647 = vmatprep.subr.mxu0 0.0
    %648 = vmatpush2.msra.mxu0 0.0
    %649 = vmatprep.subr.mxu0 0.0
    %650 = vmatpush2.msra.mxu0 0.0
    %651 = vmatprep.subr.mxu0 0.0
    %652 = vmatpush2.msra.mxu0 0.0
    %653 = vmatprep.subr.mxu0 0.0
    %654 = vmatpush2.msra.mxu0 0.0
    %655 = vmatprep.subr.mxu0 0.0
    %656 = vmatpush2.msra.mxu0 0.0
    %657 = vmatprep.subr.mxu0 0.0
    %658 = vmatpush2.msra.mxu0 0.0
    %659 = vmatprep.subr.mxu0 0.0
    %660 = vmatpush2.msra.mxu0 0.0
    %661 = vmatprep.subr.mxu0 0.0
    %662 = vmatpush2.msra.mxu0 0.0
    %663 = vmatprep.subr.mxu0 0.0
    %664 = vmatpush2.msra.mxu0 0.0
    %665 = vmatprep.subr.mxu0 0.0
    %666 = vmatpush2.msra.mxu0 0.0
    %667 = vmatprep.subr.mxu0 0.0
    %668 = vmatpush2.msra.mxu0 0.0
    %669 = vmatprep.subr.mxu0 0.0
    %670 = vmatpush2.msra.mxu0 0.0
    %671 = vmatprep.mubr.f32.mxu0 0.0
    %672 = vmatmul.mubr.f32.gmra.mxu0 %v605
    %v673 = vpop.f32.mrf.mxu0
    %v674 = vadd.f32 %v76, %v673
    %v675 = vpop.f32.mrf.mxu0
    %676 = vdwg.mxu0
    %v677 = vxor.u32 %v674, 2147483648
    %v678 = vmul.f32 %v677, 1.442695
    %v679 = vpow.pop %v678
    %v680 = vadd.f32 %v679, 1.0
    %v681 = vrcp.pop %v680
    %v682 = vmul.f32 1.0, %v681
    %v683 = vtanh.pop %v674
    %v684 = vmul.f32 %v682, %v589
    %686 = vrot.lane.b32.xlu0 %v683, 32
    %v687 = vpop.permute.xlu0 %686
    %v689 = vmul.f32 %v682, %v687
    %691 = vrot.lane.b32.xlu0 %v689, 32
    %v692 = vpop.permute.xlu0 %691
    %v694 = vadd.f32 %v684, %v692
    %v695 = vtanh.pop %v694
    %697 = vrot.lane.b32.xlu0 %v695, 32
    %v698 = vpop.permute.xlu0 %697
    %v700 = vmul.f32 %v682, %v698
    %v701 = vadd.f32 %v596, %v700
    %s702 = scalar_lea.vmem [#allocation2], 48
    %v703 = vld [vmem:[%s702] sm:$0xff]
    %705 = vrot.lane.b32.xlu0 %v700, 80
    %v706 = vpop.permute.xlu0 %705
    %v708 = vsel %vm70, %v703, %v706
    %v710 = vsel %vm78, %v708, 0
    %712 = vmatprep.subr.mxu0 0.0
    %713 = vmatpush1.msra.mxu0 0.0
    %714 = vmatprep.subr.mxu0 0.0
    %715 = vmatpush1.msra.mxu0 0.0
    %716 = vmatprep.subr.mxu0 0.0
    %717 = vmatpush1.msra.mxu0 0.0
    %718 = vmatprep.subr.mxu0 0.0
    %719 = vmatpush1.msra.mxu0 0.0
    %720 = vmatprep.subr.mxu0 0.0
    %721 = vmatpush1.msra.mxu0 0.0
    %722 = vmatprep.subr.mxu0 0.0
    %723 = vmatpush1.msra.mxu0 0.0
    %724 = vmatprep.subr.mxu0 0.0
    %725 = vmatpush1.msra.mxu0 0.0
    %726 = vmatprep.subr.mxu0 0.0
    %727 = vmatpush1.msra.mxu0 0.0
    %728 = vmatprep.subr.mxu0 0.0
    %729 = vmatpush1.msra.mxu0 0.0
    %730 = vmatprep.subr.mxu0 0.0
    %731 = vmatpush1.msra.mxu0 0.0
    %732 = vmatprep.subr.mxu0 0.0
    %733 = vmatpush1.msra.mxu0 %v67
    %734 = vmatprep.subr.mxu0 0.0
    %735 = vmatpush1.msra.mxu0 %v66
    %736 = vmatprep.subr.mxu0 0.0
    %737 = vmatpush1.msra.mxu0 %v65
    %738 = vmatprep.subr.mxu0 0.0
    %739 = vmatpush1.msra.mxu0 %v64
    %740 = vmatprep.subr.mxu0 0.0
    %741 = vmatpush1.msra.mxu0 %v63
    %742 = vmatprep.subr.mxu0 0.0
    %743 = vmatpush1.msra.mxu0 %v62
    %744 = vmatprep.subr.mxu0 0.0
    %745 = vmatpush2.msra.mxu0 0.0
    %746 = vmatprep.subr.mxu0 0.0
    %747 = vmatpush2.msra.mxu0 0.0
    %748 = vmatprep.subr.mxu0 0.0
    %749 = vmatpush2.msra.mxu0 0.0
    %750 = vmatprep.subr.mxu0 0.0
    %751 = vmatpush2.msra.mxu0 0.0
    %752 = vmatprep.subr.mxu0 0.0
    %753 = vmatpush2.msra.mxu0 0.0
    %754 = vmatprep.subr.mxu0 0.0
    %755 = vmatpush2.msra.mxu0 0.0
    %756 = vmatprep.subr.mxu0 0.0
    %757 = vmatpush2.msra.mxu0 0.0
    %758 = vmatprep.subr.mxu0 0.0
    %759 = vmatpush2.msra.mxu0 0.0
    %760 = vmatprep.subr.mxu0 0.0
    %761 = vmatpush2.msra.mxu0 0.0
    %762 = vmatprep.subr.mxu0 0.0
    %763 = vmatpush2.msra.mxu0 0.0
    %764 = vmatprep.subr.mxu0 0.0
    %765 = vmatpush2.msra.mxu0 0.0
    %766 = vmatprep.subr.mxu0 0.0
    %767 = vmatpush2.msra.mxu0 0.0
    %768 = vmatprep.subr.mxu0 0.0
    %769 = vmatpush2.msra.mxu0 0.0
    %770 = vmatprep.subr.mxu0 0.0
    %771 = vmatpush2.msra.mxu0 0.0
    %772 = vmatprep.subr.mxu0 0.0
    %773 = vmatpush2.msra.mxu0 0.0
    %774 = vmatprep.subr.mxu0 0.0
    %775 = vmatpush2.msra.mxu0 0.0
    %776 = vmatprep.mubr.f32.mxu0 0.0
    %777 = vmatmul.mubr.f32.gmra.mxu0 %v710
    %v778 = vpop.f32.mrf.mxu0
    %v779 = vadd.f32 %v76, %v778
    %v780 = vpop.f32.mrf.mxu0
    %781 = vdwg.mxu0
    %v782 = vxor.u32 %v779, 2147483648
    %v783 = vmul.f32 %v782, 1.442695
    %v784 = vpow.pop %v783
    %v785 = vadd.f32 %v784, 1.0
    %v786 = vrcp.pop %v785
    %v787 = vmul.f32 1.0, %v786
    %v788 = vtanh.pop %v779
    %v789 = vmul.f32 %v787, %v694
    %791 = vrot.lane.b32.xlu0 %v788, 32
    %v792 = vpop.permute.xlu0 %791
    %v794 = vmul.f32 %v787, %v792
    %796 = vrot.lane.b32.xlu0 %v794, 32
    %v797 = vpop.permute.xlu0 %796
    %v799 = vadd.f32 %v789, %v797
    %v800 = vtanh.pop %v799
    %802 = vrot.lane.b32.xlu0 %v800, 32
    %v803 = vpop.permute.xlu0 %802
    %v805 = vmul.f32 %v787, %v803
    %v806 = vadd.f32 %v701, %v805
    %s807 = scalar_lea.vmem [#allocation2], 56
    %v808 = vld [vmem:[%s807] sm:$0xff]
    %810 = vrot.lane.b32.xlu0 %v805, 80
    %v811 = vpop.permute.xlu0 %810
    %v813 = vsel %vm70, %v808, %v811
    %v815 = vsel %vm78, %v813, 0
    %817 = vmatprep.subr.mxu0 0.0
    %818 = vmatpush1.msra.mxu0 0.0
    %819 = vmatprep.subr.mxu0 0.0
    %820 = vmatpush1.msra.mxu0 0.0
    %821 = vmatprep.subr.mxu0 0.0
    %822 = vmatpush1.msra.mxu0 0.0
    %823 = vmatprep.subr.mxu0 0.0
    %824 = vmatpush1.msra.mxu0 0.0
    %825 = vmatprep.subr.mxu0 0.0
    %826 = vmatpush1.msra.mxu0 0.0
    %827 = vmatprep.subr.mxu0 0.0
    %828 = vmatpush1.msra.mxu0 0.0
    %829 = vmatprep.subr.mxu0 0.0
    %830 = vmatpush1.msra.mxu0 0.0
    %831 = vmatprep.subr.mxu0 0.0
    %832 = vmatpush1.msra.mxu0 0.0
    %833 = vmatprep.subr.mxu0 0.0
    %834 = vmatpush1.msra.mxu0 0.0
    %835 = vmatprep.subr.mxu0 0.0
    %836 = vmatpush1.msra.mxu0 0.0
    %837 = vmatprep.subr.mxu0 0.0
    %838 = vmatpush1.msra.mxu0 %v67
    %839 = vmatprep.subr.mxu0 0.0
    %840 = vmatpush1.msra.mxu0 %v66
    %841 = vmatprep.subr.mxu0 0.0
    %842 = vmatpush1.msra.mxu0 %v65
    %843 = vmatprep.subr.mxu0 0.0
    %844 = vmatpush1.msra.mxu0 %v64
    %845 = vmatprep.subr.mxu0 0.0
    %846 = vmatpush1.msra.mxu0 %v63
    %847 = vmatprep.subr.mxu0 0.0
    %848 = vmatpush1.msra.mxu0 %v62
    %849 = vmatprep.subr.mxu0 0.0
    %850 = vmatpush2.msra.mxu0 0.0
    %851 = vmatprep.subr.mxu0 0.0
    %852 = vmatpush2.msra.mxu0 0.0
    %853 = vmatprep.subr.mxu0 0.0
    %854 = vmatpush2.msra.mxu0 0.0
    %855 = vmatprep.subr.mxu0 0.0
    %856 = vmatpush2.msra.mxu0 0.0
    %857 = vmatprep.subr.mxu0 0.0
    %858 = vmatpush2.msra.mxu0 0.0
    %859 = vmatprep.subr.mxu0 0.0
    %860 = vmatpush2.msra.mxu0 0.0
    %861 = vmatprep.subr.mxu0 0.0
    %862 = vmatpush2.msra.mxu0 0.0
    %863 = vmatprep.subr.mxu0 0.0
    %864 = vmatpush2.msra.mxu0 0.0
    %865 = vmatprep.subr.mxu0 0.0
    %866 = vmatpush2.msra.mxu0 0.0
    %867 = vmatprep.subr.mxu0 0.0
    %868 = vmatpush2.msra.mxu0 0.0
    %869 = vmatprep.subr.mxu0 0.0
    %870 = vmatpush2.msra.mxu0 0.0
    %871 = vmatprep.subr.mxu0 0.0
    %872 = vmatpush2.msra.mxu0 0.0
    %873 = vmatprep.subr.mxu0 0.0
    %874 = vmatpush2.msra.mxu0 0.0
    %875 = vmatprep.subr.mxu0 0.0
    %876 = vmatpush2.msra.mxu0 0.0
    %877 = vmatprep.subr.mxu0 0.0
    %878 = vmatpush2.msra.mxu0 0.0
    %879 = vmatprep.subr.mxu0 0.0
    %880 = vmatpush2.msra.mxu0 0.0
    %881 = vmatprep.mubr.f32.mxu0 0.0
    %882 = vmatmul.mubr.f32.gmra.mxu0 %v815
    %v883 = vpop.f32.mrf.mxu0
    %v884 = vadd.f32 %v76, %v883
    %v885 = vpop.f32.mrf.mxu0
    %886 = vdwg.mxu0
    %v887 = vxor.u32 %v884, 2147483648
    %v888 = vmul.f32 %v887, 1.442695
    %v889 = vpow.pop %v888
    %v890 = vadd.f32 %v889, 1.0
    %v891 = vrcp.pop %v890
    %v892 = vmul.f32 1.0, %v891
    %v893 = vtanh.pop %v884
    %v894 = vmul.f32 %v892, %v799
    %896 = vrot.lane.b32.xlu0 %v893, 32
    %v897 = vpop.permute.xlu0 %896
    %v899 = vmul.f32 %v892, %v897
    %901 = vrot.lane.b32.xlu0 %v899, 32
    %v902 = vpop.permute.xlu0 %901
    %v904 = vadd.f32 %v894, %v902
    %v905 = vtanh.pop %v904
    %907 = vrot.lane.b32.xlu0 %v905, 32
    %v908 = vpop.permute.xlu0 %907
    %v910 = vmul.f32 %v892, %v908
    %v911 = vadd.f32 %v806, %v910
    %v912 = vld [vmem:[#allocation7] sm:$0xff]
    %v913 = vld [vmem:[#allocation7 + $0x8] sm:$0xff]
    %v914 = vld [vmem:[#allocation7 + $0x10] sm:$0xff]
    %v915 = vld [vmem:[#allocation7 + $0x18] sm:$0xff]
    %v916 = vld [vmem:[%s4] sm:$0x1]
    %v918 = vlaneseq
    %v919 = vshrl.u32 %v918, 7
    %v920 = vsub.s32 0, %v919
    %v921 = vrot.slane %v916, %v920
    %924 = vrot.lane.b32.xlu0 %v911, 64
    %v925 = vpop.permute.xlu0 %924
    %vm926 = vcmask 261120
    %v927 = vsel %vm926, %v925, 0
    %929 = vmatprep.subr.mxu0 0.0
    %930 = vmatpush1.msra.mxu0 0.0
    %931 = vmatprep.subr.mxu0 0.0
    %932 = vmatpush1.msra.mxu0 0.0
    %933 = vmatprep.subr.mxu0 0.0
    %934 = vmatpush1.msra.mxu0 0.0
    %935 = vmatprep.subr.mxu0 0.0
    %936 = vmatpush1.msra.mxu0 0.0
    %937 = vmatprep.subr.mxu0 0.0
    %938 = vmatpush1.msra.mxu0 0.0
    %939 = vmatprep.subr.mxu0 0.0
    %940 = vmatpush1.msra.mxu0 0.0
    %941 = vmatprep.subr.mxu0 0.0
    %942 = vmatpush1.msra.mxu0 0.0
    %943 = vmatprep.subr.mxu0 0.0
    %944 = vmatpush1.msra.mxu0 0.0
    %945 = vmatprep.subr.mxu0 0.0
    %946 = vmatpush1.msra.mxu0 0.0
    %947 = vmatprep.subr.mxu0 0.0
    %948 = vmatpush1.msra.mxu0 0.0
    %949 = vmatprep.subr.mxu0 0.0
    %950 = vmatpush1.msra.mxu0 0.0
    %951 = vmatprep.subr.mxu0 0.0
    %952 = vmatpush1.msra.mxu0 0.0
    %953 = vmatprep.subr.mxu0 0.0
    %954 = vmatpush1.msra.mxu0 %v915
    %955 = vmatprep.subr.mxu0 0.0
    %956 = vmatpush1.msra.mxu0 %v914
    %957 = vmatprep.subr.mxu0 0.0
    %958 = vmatpush1.msra.mxu0 %v913
    %959 = vmatprep.subr.mxu0 0.0
    %960 = vmatpush1.msra.mxu0 %v912
    %961 = vmatprep.subr.mxu0 0.0
    %962 = vmatpush2.msra.mxu0 0.0
    %963 = vmatprep.subr.mxu0 0.0
    %964 = vmatpush2.msra.mxu0 0.0
    %965 = vmatprep.subr.mxu0 0.0
    %966 = vmatpush2.msra.mxu0 0.0
    %967 = vmatprep.subr.mxu0 0.0
    %968 = vmatpush2.msra.mxu0 0.0
    %969 = vmatprep.subr.mxu0 0.0
    %970 = vmatpush2.msra.mxu0 0.0
    %971 = vmatprep.subr.mxu0 0.0
    %972 = vmatpush2.msra.mxu0 0.0
    %973 = vmatprep.subr.mxu0 0.0
    %974 = vmatpush2.msra.mxu0 0.0
    %975 = vmatprep.subr.mxu0 0.0
    %976 = vmatpush2.msra.mxu0 0.0
    %977 = vmatprep.subr.mxu0 0.0
    %978 = vmatpush2.msra.mxu0 0.0
    %979 = vmatprep.subr.mxu0 0.0
    %980 = vmatpush2.msra.mxu0 0.0
    %981 = vmatprep.subr.mxu0 0.0
    %982 = vmatpush2.msra.mxu0 0.0
    %983 = vmatprep.subr.mxu0 0.0
    %984 = vmatpush2.msra.mxu0 0.0
    %985 = vmatprep.subr.mxu0 0.0
    %986 = vmatpush2.msra.mxu0 0.0
    %987 = vmatprep.subr.mxu0 0.0
    %988 = vmatpush2.msra.mxu0 0.0
    %989 = vmatprep.subr.mxu0 0.0
    %990 = vmatpush2.msra.mxu0 0.0
    %991 = vmatprep.subr.mxu0 0.0
    %992 = vmatpush2.msra.mxu0 0.0
    %993 = vmatprep.mubr.f32.mxu0 0.0
    %994 = vmatmul.mubr.f32.gmra.mxu0 %v927
    %v995 = vpop.f32.mrf.mxu0
    %v996 = vadd.f32 %v921, %v995
    %v997 = vpop.f32.mrf.mxu0
    %998 = vdwg.mxu0
    %999 = vst [vmem:[#allocation8] sm:$0xff] %v996
    // Predicated region
    $region34: #{tpu_custom_call.1} parent=1 // pred_check
      _
    $region35: #{tpu_custom_call.1} parent=1 // pred_check_branch
      %1001 = sbr.rel (0) target = $region37
    $region36: #{tpu_custom_call.1} parent=1 // pred_region
      %s1003 = ssub.s32 128, 128
      %1004 = vsyncadd [#allocation4], %s1003
      %s1006 = sshll.u32 [#allocation8], 4
      %s1007 = int_to_ptr.vmem [resolvable:$true] %s1006
      %1009 = dma.vmem_to_hbm [thread:$0]  %s1007, 128, %s5, [#allocation4]
    $region37: #{tpu_custom_call.1} parent=1 // pred_fallthru
      _
    // Predicated region
    $region38: #{tpu_custom_call.1} parent=1 // pred_check
      _
    $region39: #{tpu_custom_call.1} parent=1 // pred_check_branch
      %1011 = sbr.rel (0) target = $region41
    $region40: #{tpu_custom_call.1} parent=1 // pred_region
      %1012 = dma.done [#allocation4], 128
    $region41: #{tpu_custom_call.1} parent=1 // pred_fallthru
      _
    %1013 = vsyncpa [#allocation3], 1
    %1014 = vsyncpa [#allocation6], 1
    %1015 = vsyncpa [#allocation4], 1

</llo_original>
